<compile_context>
chip_gen: v7x
topology: tpu7x:2x2x1
jax: 0.10.0
libtpu: 0.0.40
codegen_flags: <defaults>
</compile_context>

<pallas_src>
import functools

import jax
import jax.numpy as jnp
from jax.experimental import pallas as pl
from jax.experimental.pallas import tpu as pltpu

_LANE = 128      # lane width of a vreg
_SUBLANE = 8     # f32 sublanes of a vreg


def _round_up(x, m):
    return ((x + m - 1) // m) * m


def _gate_block_pad(mat, hidden, hidden_pad):
    """(K, 4H) gate-major matrix -> (K, 4*Hp), gate g occupying lanes
    [g*Hp, g*Hp + H) so every gate slice is 128-lane aligned in the kernel."""
    blocks = []
    for g in range(4):
        blk = mat[:, g * hidden:(g + 1) * hidden]
        blk = jnp.pad(blk, ((0, 0), (0, hidden_pad - hidden)))
        blocks.append(blk)
    return jnp.concatenate(blocks, axis=1)


def _lstm_stack_kernel(x_ref, h0_ref, c0_ref, w_ref, b_ref,
                       out_ref, h_out_ref, c_out_ref, xh_ref,
                       *, in_pad, hidden_pad):
    """One grid step == one LSTM layer. Activation carried in VMEM scratch."""
    layer = pl.program_id(0)
    Fp, Hp = in_pad, hidden_pad

    # Layer 0 reads the external input; later layers reuse the previous
    # layer's h_new already sitting in xh_ref[:, :Fp].
    @pl.when(layer == 0)
    def _():
        xh_ref[:, :Fp] = x_ref[...]

    # Put this layer's previous hidden state next to the input slot so the
    # gate pre-activation is a single lane-dense MXU matmul:
    #   (Bp, Fp+Hp) @ (Fp+Hp, 4*Hp)
    xh_ref[:, Fp:] = h0_ref[0]

    gates = jnp.dot(xh_ref[...], w_ref[0],
                    preferred_element_type=jnp.float32) + b_ref[0]

    # Gate slices are 128-lane aligned (padded gate blocks).
    i_g = jax.nn.sigmoid(gates[:, 0 * Hp:1 * Hp])
    f_g = jax.nn.sigmoid(gates[:, 1 * Hp:2 * Hp])
    g_g = jnp.tanh(gates[:, 2 * Hp:3 * Hp])
    o_g = jax.nn.sigmoid(gates[:, 3 * Hp:4 * Hp])

    c_new = f_g * c0_ref[0].astype(jnp.float32) + i_g * g_g
    h_new = o_g * jnp.tanh(c_new)

    # Lane-dense (Bp, Hp) stores — unmasked vst.
    h_out_ref[0] = h_new.astype(h_out_ref.dtype)
    c_out_ref[0] = c_new.astype(c_out_ref.dtype)
    out_ref[...] = h_new.astype(out_ref.dtype)

    # Feed h_new forward as the next layer's input (all layers are
    # rnn_size -> rnn_size in this model, so Fp == Hp).
    xh_ref[:, :Fp] = h_new.astype(xh_ref.dtype)


def _fused_lstm_stack_step(x, h0, c0, w_packed, b_packed):
    """x: (B, F); h0/c0: (L, B, H); w_packed: (L, Fp+Hp, 4Hp); b_packed: (L, 1, 4Hp)."""
    B, F = x.shape
    L, _, H = h0.shape
    Kp, G = w_packed.shape[1], w_packed.shape[2]
    Hp = G // 4
    Fp = Kp - Hp
    Bp = _round_up(B, _SUBLANE)

    # Pad activations/states to vreg-aligned shapes (zero padding is
    # self-consistent: padded gate columns stay exactly zero through the cell).
    x_p = jnp.pad(x, ((0, Bp - B), (0, Fp - F)))
    h_p = jnp.pad(h0, ((0, 0), (0, Bp - B), (0, Hp - H)))
    c_p = jnp.pad(c0, ((0, 0), (0, Bp - B), (0, Hp - H)))

    kernel = functools.partial(_lstm_stack_kernel, in_pad=Fp, hidden_pad=Hp)

    out_p, h_new_p, c_new_p = pl.pallas_call(
        kernel,
        grid=(L,),
        in_specs=[
            pl.BlockSpec((Bp, Fp), lambda l: (0, 0)),          # x: resident
            pl.BlockSpec((1, Bp, Hp), lambda l: (l, 0, 0)),    # h0[l]
            pl.BlockSpec((1, Bp, Hp), lambda l: (l, 0, 0)),    # c0[l]
            pl.BlockSpec((1, Kp, G), lambda l: (l, 0, 0)),     # W[l] (double-buffered)
            pl.BlockSpec((1, 1, G), lambda l: (l, 0, 0)),      # bias[l]
        ],
        out_specs=(
            pl.BlockSpec((Bp, Hp), lambda l: (0, 0)),          # final-layer output
            pl.BlockSpec((1, Bp, Hp), lambda l: (l, 0, 0)),    # h_new[l]
            pl.BlockSpec((1, Bp, Hp), lambda l: (l, 0, 0)),    # c_new[l]
        ),
        out_shape=(
            jax.ShapeDtypeStruct((Bp, Hp), x.dtype),
            jax.ShapeDtypeStruct((L, Bp, Hp), h0.dtype),
            jax.ShapeDtypeStruct((L, Bp, Hp), c0.dtype),
        ),
        scratch_shapes=[pltpu.VMEM((Bp, Fp + Hp), jnp.float32)],
        # Recurrent state buffers updated in place (h0->h_new, c0->c_new).
        input_output_aliases={1: 1, 2: 2},
        compiler_params=pltpu.CompilerParams(
            dimension_semantics=("arbitrary",)),
        cost_estimate=pl.CostEstimate(
            flops=2 * L * Bp * Kp * G,
            transcendentals=5 * L * Bp * Hp,
            bytes_accessed=4 * (L * Kp * G + L * G + 4 * L * Bp * Hp
                                + Bp * Fp + Bp * Hp),
        ),
    )(x_p, h_p, c_p, w_packed, b_packed)

    return out_p[:B, :H], h_new_p[:, :B, :H], c_new_p[:, :B, :H]


class FusedMultiLayerLSTMCell:
    """JAX/Pallas equivalent of MultiRNNCell(_get_simple_lstm(rnn_size, layer_size)):
    a stack of rnn_size -> rnn_size recurrent cells, fused into one kernel."""

    def __init__(self, rnn_size, num_layers, key, dtype=jnp.float32):
        self.rnn_size = rnn_size
        self.num_layers = num_layers
        self.dtype = dtype

        H = rnn_size
        Hp = _round_up(H, _LANE)
        Fp = Hp                      # input size == hidden size (rnn_size) per layer
        self.H, self.Hp, self.Fp = H, Hp, Fp

        scale = float(H) ** -0.5
        params, w_blocks, b_blocks = [], [], []
        for _ in range(num_layers):
            key, k1, k2, k3, k4 = jax.random.split(key, 5)
            w_ih = jax.random.uniform(k1, (4 * H, H), dtype, -scale, scale)
            w_hh = jax.random.uniform(k2, (4 * H, H), dtype, -scale, scale)
            b_ih = jax.random.uniform(k3, (4 * H,), dtype, -scale, scale)
            b_hh = jax.random.uniform(k4, (4 * H,), dtype, -scale, scale)
            params.append((w_ih, w_hh, b_ih, b_hh))

            # Pre-pack ONCE at init (hoisted out of the step):
            #   transpose to lane-dense, gate-block-pad the 4H axis to 4*Hp,
            #   pad K rows, and concat [W_ih^T ; W_hh^T] along K.
            wih_t = _gate_block_pad(w_ih.T, H, Hp)            # (H, 4Hp)
            whh_t = _gate_block_pad(w_hh.T, H, Hp)            # (H, 4Hp)
            wih_t = jnp.pad(wih_t, ((0, Fp - H), (0, 0)))     # (Fp, 4Hp)
            whh_t = jnp.pad(whh_t, ((0, Hp - H), (0, 0)))     # (Hp, 4Hp)
            w_blocks.append(jnp.concatenate([wih_t, whh_t], axis=0))
            b_blocks.append(
                _gate_block_pad((b_ih + b_hh).reshape(1, 4 * H), H, Hp))

        self.params = params                                  # original (for reference)
        self.w_packed = jnp.stack(w_blocks)                   # (L, Fp+Hp, 4Hp)
        self.b_packed = jnp.stack(b_blocks)                   # (L, 1, 4Hp)
        self._step = jax.jit(_fused_lstm_stack_step)

    def zero_state(self, batch_size, dtype):
        H = self.rnn_size
        return tuple((jnp.zeros((batch_size, H), dtype),
                      jnp.zeros((batch_size, H), dtype))
                     for _ in range(self.num_layers))

    def __call__(self, input_tensor, hidden_states):
        h0 = jnp.stack([h for (h, _) in hidden_states])       # (L, B, H)
        c0 = jnp.stack([c for (_, c) in hidden_states])       # (L, B, H)
        out, h_new, c_new = self._step(input_tensor, h0, c0,
                                       self.w_packed, self.b_packed)
        new_states = tuple((h_new[l], c_new[l]) for l in range(self.num_layers))
        return out, new_states


def _lstm_stack_ref(x, states, params):
    """Pure-JAX reference (mirrors a stack of torch.nn.LSTMCell)."""
    out = x
    new_states = []
    for (w_ih, w_hh, b_ih, b_hh), (h, c) in zip(params, states):
        gates = out @ w_ih.T + h @ w_hh.T + b_ih + b_hh
        H = h.shape[1]
        i_g = jax.nn.sigmoid(gates[:, 0 * H:1 * H])
        f_g = jax.nn.sigmoid(gates[:, 1 * H:2 * H])
        g_g = jnp.tanh(gates[:, 2 * H:3 * H])
        o_g = jax.nn.sigmoid(gates[:, 3 * H:4 * H])
        c_new = f_g * c + i_g * g_g
        h_new = o_g * jnp.tanh(c_new)
        new_states.append((h_new, c_new))
        out = h_new
    return out, tuple(new_states)


if __name__ == "__main__":
    key = jax.random.PRNGKey(0)
    key, k_params, k_x, k_h = jax.random.split(key, 4)

    batch = 8
    rnn_size = 32        # hidden == input == rnn_size, as in the PPO model
    num_layers = 2       # layer_size

    cell = FusedMultiLayerLSTMCell(rnn_size, num_layers, k_params,
                                   dtype=jnp.float32)

    x = jax.random.normal(k_x, (batch, rnn_size), jnp.float32)

    # Non-zero initial states for a stricter check.
    hs = []
    for _ in range(num_layers):
        k_h, k1, k2 = jax.random.split(k_h, 3)
        hs.append((0.1 * jax.random.normal(k1, (batch, rnn_size), jnp.float32),
                   0.1 * jax.random.normal(k2, (batch, rnn_size), jnp.float32)))
    hidden_states = tuple(hs)

    out, new_states = cell(x, hidden_states)
    out = jax.block_until_ready(out)

    # Reference check against a pure-JAX LSTM stack using the original params.
    ref_out, ref_states = _lstm_stack_ref(x, hidden_states, cell.params)
    assert jnp.allclose(out, ref_out, atol=1e-4, rtol=1e-4)
    for (h_k, c_k), (h_r, c_r) in zip(new_states, ref_states):
        assert jnp.allclose(h_k, h_r, atol=1e-4, rtol=1e-4)
        assert jnp.allclose(c_k, c_r, atol=1e-4, rtol=1e-4)

    # Exercise recurrent use (as inside dynamic_interactive_decode):
    # state threads through repeated fused-kernel steps.
    states = cell.zero_state(batch, jnp.float32)
    step_in = x
    for _ in range(3):
        step_in, states = cell(step_in, states)
    jax.block_until_ready(step_in)

    print("KERNEL_OK")
</pallas_src>

<mosaic_0001>
module attributes {stable_mosaic.version = 11 : i64} {
  func.func @_lstm_stack_kernel(%arg0: i32, %arg1: memref<8x128xf32, #tpu.memory_space<vmem>>, %arg2: memref<1x8x128xf32, #tpu.memory_space<vmem>>, %arg3: memref<1x8x128xf32, #tpu.memory_space<vmem>>, %arg4: memref<1x256x512xf32, #tpu.memory_space<vmem>>, %arg5: memref<1x1x512xf32, #tpu.memory_space<vmem>>, %arg6: memref<8x128xf32, #tpu.memory_space<vmem>>, %arg7: memref<1x8x128xf32, #tpu.memory_space<vmem>>, %arg8: memref<1x8x128xf32, #tpu.memory_space<vmem>>, %arg9: memref<8x256xf32, #tpu.memory_space<vmem>>) attributes {dimension_semantics = [#tpu.dimension_semantics<arbitrary>], iteration_bounds = array<i64: 2>, scalar_prefetch = 0 : i64, scratch_operands = 1 : i64, tpu.core_type = #tpu.core_type<tc>, window_params = [{pipeline_mode = #tpu.pipeline_mode<synchronous>, transform_indices = @transform_0, window_bounds = array<i64: 8, 128>}, {transform_indices = @transform_1, window_bounds = array<i64: 1, 8, 128>}, {transform_indices = @transform_2, window_bounds = array<i64: 1, 8, 128>}, {transform_indices = @transform_3, window_bounds = array<i64: 1, 256, 512>}, {transform_indices = @transform_4, window_bounds = array<i64: 1, 1, 512>}, {pipeline_mode = #tpu.pipeline_mode<synchronous>, transform_indices = @transform_5, window_bounds = array<i64: 8, 128>}, {transform_indices = @transform_6, window_bounds = array<i64: 1, 8, 128>}, {transform_indices = @transform_7, window_bounds = array<i64: 1, 8, 128>}]} {
    %c0_i32 = arith.constant 0 : i32
    %0 = arith.cmpi eq, %arg0, %c0_i32 : i32
    %1 = arith.extui %0 : i1 to i32
    %c0_i32_0 = arith.constant 0 : i32
    %2 = arith.cmpi ne, %1, %c0_i32_0 : i32
    scf.if %2 {
      %c0_28 = arith.constant 0 : index
      %c0_29 = arith.constant 0 : index
      %49 = vector.load %arg1[%c0_28, %c0_29] : memref<8x128xf32, #tpu.memory_space<vmem>>, vector<8x128xf32>
      %c0_30 = arith.constant 0 : index
      %c0_31 = arith.constant 0 : index
      %50 = vector.load %arg9[%c0_30, %c0_31] : memref<8x256xf32, #tpu.memory_space<vmem>>, vector<8x128xf32>
      tpu.vector_store %arg9[%c0_30, %c0_31], %49 {strides = array<i32>} : memref<8x256xf32, #tpu.memory_space<vmem>>, vector<8x128xf32>,
    } else {
    }
    %c0 = arith.constant 0 : index
    %c0_1 = arith.constant 0 : index
    %c0_2 = arith.constant 0 : index
    %3 = vector.load %arg2[%c0, %c0_1, %c0_2] : memref<1x8x128xf32, #tpu.memory_space<vmem>>, vector<1x8x128xf32>
    %4 = vector.shape_cast %3 : vector<1x8x128xf32> to vector<8x128xf32>
    %c0_3 = arith.constant 0 : index
    %c128 = arith.constant 128 : index
    %5 = vector.load %arg9[%c0_3, %c128] : memref<8x256xf32, #tpu.memory_space<vmem>>, vector<8x128xf32>
    tpu.vector_store %arg9[%c0_3, %c128], %4 {strides = array<i32>} : memref<8x256xf32, #tpu.memory_space<vmem>>, vector<8x128xf32>,
    %c0_4 = arith.constant 0 : index
    %c0_5 = arith.constant 0 : index
    %6 = vector.load %arg9[%c0_4, %c0_5] : memref<8x256xf32, #tpu.memory_space<vmem>>, vector<8x256xf32>
    %c0_6 = arith.constant 0 : index
    %c0_7 = arith.constant 0 : index
    %c0_8 = arith.constant 0 : index
    %7 = vector.load %arg4[%c0_6, %c0_7, %c0_8] : memref<1x256x512xf32, #tpu.memory_space<vmem>>, vector<1x256x512xf32>
    %8 = vector.shape_cast %7 : vector<1x256x512xf32> to vector<256x512xf32>
    %cst = arith.constant dense<0.000000e+00> : vector<8x512xf32>
    %9 = tpu.matmul %6, %8, %cst {dimension_numbers = #tpu.dot_dimension_numbers<[1], [0], [0], [1], [0, 0, 1, 1], [], []>} : vector<8x256xf32>, vector<256x512xf32>, vector<8x512xf32> -> vector<8x512xf32>
    %c0_9 = arith.constant 0 : index
    %c0_10 = arith.constant 0 : index
    %c0_11 = arith.constant 0 : index
    %10 = vector.load %arg5[%c0_9, %c0_10, %c0_11] : memref<1x1x512xf32, #tpu.memory_space<vmem>>, vector<1x1x512xf32>
    %11 = vector.shape_cast %10 : vector<1x1x512xf32> to vector<1x512xf32>
    %12 = vector.broadcast %11 : vector<1x512xf32> to vector<8x512xf32>
    %13 = arith.addf %9, %12 : vector<8x512xf32>
    %14 = vector.extract_strided_slice %13 {offsets = [0, 0], sizes = [8, 128], strides = [1, 1]} : vector<8x512xf32> to vector<8x128xf32>
    %15 = arith.negf %14 : vector<8x128xf32>
    %16 = math.exp %15 : vector<8x128xf32>
    %cst_12 = arith.constant 1.000000e+00 : f32
    %17 = vector.broadcast %cst_12 : f32 to vector<8x128xf32>
    %18 = arith.addf %17, %16 : vector<8x128xf32>
    %19 = arith.divf %17, %18 : vector<8x128xf32>
    %20 = vector.extract_strided_slice %13 {offsets = [0, 128], sizes = [8, 128], strides = [1, 1]} : vector<8x512xf32> to vector<8x128xf32>
    %21 = arith.negf %20 : vector<8x128xf32>
    %22 = math.exp %21 : vector<8x128xf32>
    %cst_13 = arith.constant 1.000000e+00 : f32
    %23 = vector.broadcast %cst_13 : f32 to vector<8x128xf32>
    %24 = arith.addf %23, %22 : vector<8x128xf32>
    %25 = arith.divf %23, %24 : vector<8x128xf32>
    %26 = vector.extract_strided_slice %13 {offsets = [0, 256], sizes = [8, 128], strides = [1, 1]} : vector<8x512xf32> to vector<8x128xf32>
    %27 = math.tanh %26 : vector<8x128xf32>
    %28 = vector.extract_strided_slice %13 {offsets = [0, 384], sizes = [8, 128], strides = [1, 1]} : vector<8x512xf32> to vector<8x128xf32>
    %29 = arith.negf %28 : vector<8x128xf32>
    %30 = math.exp %29 : vector<8x128xf32>
    %cst_14 = arith.constant 1.000000e+00 : f32
    %31 = vector.broadcast %cst_14 : f32 to vector<8x128xf32>
    %32 = arith.addf %31, %30 : vector<8x128xf32>
    %33 = arith.divf %31, %32 : vector<8x128xf32>
    %c0_15 = arith.constant 0 : index
    %c0_16 = arith.constant 0 : index
    %c0_17 = arith.constant 0 : index
    %34 = vector.load %arg3[%c0_15, %c0_16, %c0_17] : memref<1x8x128xf32, #tpu.memory_space<vmem>>, vector<1x8x128xf32>
    %35 = vector.shape_cast %34 : vector<1x8x128xf32> to vector<8x128xf32>
    %36 = arith.mulf %25, %35 : vector<8x128xf32>
    %37 = arith.mulf %19, %27 : vector<8x128xf32>
    %38 = arith.addf %36, %37 : vector<8x128xf32>
    %39 = math.tanh %38 : vector<8x128xf32>
    %40 = arith.mulf %33, %39 : vector<8x128xf32>
    %c0_18 = arith.constant 0 : index
    %c0_19 = arith.constant 0 : index
    %c0_20 = arith.constant 0 : index
    %41 = vector.load %arg7[%c0_18, %c0_19, %c0_20] : memref<1x8x128xf32, #tpu.memory_space<vmem>>, vector<1x8x128xf32>
    %42 = vector.shape_cast %41 : vector<1x8x128xf32> to vector<8x128xf32>
    %43 = vector.shape_cast %40 : vector<8x128xf32> to vector<1x8x128xf32>
    tpu.vector_store %arg7[%c0_18, %c0_19, %c0_20], %43 {strides = array<i32>} : memref<1x8x128xf32, #tpu.memory_space<vmem>>, vector<1x8x128xf32>,
    %c0_21 = arith.constant 0 : index
    %c0_22 = arith.constant 0 : index
    %c0_23 = arith.constant 0 : index
    %44 = vector.load %arg8[%c0_21, %c0_22, %c0_23] : memref<1x8x128xf32, #tpu.memory_space<vmem>>, vector<1x8x128xf32>
    %45 = vector.shape_cast %44 : vector<1x8x128xf32> to vector<8x128xf32>
    %46 = vector.shape_cast %38 : vector<8x128xf32> to vector<1x8x128xf32>
    tpu.vector_store %arg8[%c0_21, %c0_22, %c0_23], %46 {strides = array<i32>} : memref<1x8x128xf32, #tpu.memory_space<vmem>>, vector<1x8x128xf32>,
    %c0_24 = arith.constant 0 : index
    %c0_25 = arith.constant 0 : index
    %47 = vector.load %arg6[%c0_24, %c0_25] : memref<8x128xf32, #tpu.memory_space<vmem>>, vector<8x128xf32>
    tpu.vector_store %arg6[%c0_24, %c0_25], %40 {strides = array<i32>} : memref<8x128xf32, #tpu.memory_space<vmem>>, vector<8x128xf32>,
    %c0_26 = arith.constant 0 : index
    %c0_27 = arith.constant 0 : index
    %48 = vector.load %arg9[%c0_26, %c0_27] : memref<8x256xf32, #tpu.memory_space<vmem>>, vector<8x128xf32>
    tpu.vector_store %arg9[%c0_26, %c0_27], %40 {strides = array<i32>} : memref<8x256xf32, #tpu.memory_space<vmem>>, vector<8x128xf32>,
    return
  }
  func.func @transform_0(%arg0: i32) -> (i32, i32) {
    %c0_i32 = arith.constant 0 : i32
    %c0_i32_0 = arith.constant 0 : i32
    %c0_i32_1 = arith.constant 0 : i32
    return %c0_i32, %c0_i32_0 : i32, i32
  }
  func.func @transform_1(%arg0: i32) -> (i32, i32, i32) {
    %c0_i32 = arith.constant 0 : i32
    %c0_i32_0 = arith.constant 0 : i32
    %c0_i32_1 = arith.constant 0 : i32
    return %arg0, %c0_i32, %c0_i32_0 : i32, i32, i32
  }
  func.func @transform_2(%arg0: i32) -> (i32, i32, i32) {
    %c0_i32 = arith.constant 0 : i32
    %c0_i32_0 = arith.constant 0 : i32
    %c0_i32_1 = arith.constant 0 : i32
    return %arg0, %c0_i32, %c0_i32_0 : i32, i32, i32
  }
  func.func @transform_3(%arg0: i32) -> (i32, i32, i32) {
    %c0_i32 = arith.constant 0 : i32
    %c0_i32_0 = arith.constant 0 : i32
    %c0_i32_1 = arith.constant 0 : i32
    return %arg0, %c0_i32, %c0_i32_0 : i32, i32, i32
  }
  func.func @transform_4(%arg0: i32) -> (i32, i32, i32) {
    %c0_i32 = arith.constant 0 : i32
    %c0_i32_0 = arith.constant 0 : i32
    %c0_i32_1 = arith.constant 0 : i32
    return %arg0, %c0_i32, %c0_i32_0 : i32, i32, i32
  }
  func.func @transform_5(%arg0: i32) -> (i32, i32) {
    %c0_i32 = arith.constant 0 : i32
    %c0_i32_0 = arith.constant 0 : i32
    %c0_i32_1 = arith.constant 0 : i32
    return %c0_i32, %c0_i32_0 : i32, i32
  }
  func.func @transform_6(%arg0: i32) -> (i32, i32, i32) {
    %c0_i32 = arith.constant 0 : i32
    %c0_i32_0 = arith.constant 0 : i32
    %c0_i32_1 = arith.constant 0 : i32
    return %arg0, %c0_i32, %c0_i32_0 : i32, i32, i32
  }
  func.func @transform_7(%arg0: i32) -> (i32, i32, i32) {
    %c0_i32 = arith.constant 0 : i32
    %c0_i32_0 = arith.constant 0 : i32
    %c0_i32_1 = arith.constant 0 : i32
    return %arg0, %c0_i32, %c0_i32_0 : i32, i32, i32
  }
}

</mosaic_0001>

<llo_original>
// kernel: _fused_lstm_stack_step.1
$region0: #{_fused_lstm_stack_step.1}
  #allocation0 [shape = 'u32[]', space=smem, size = 0x4, offset = 0x4, fixed_abs, tag = 'smem constant byte address 0x4 - core index']
  #allocation1 [shape = 'u32[144,128]{1,0:T(1,128)}', space=vmem, size = 0x12000, scoped, tag = 'internal scratch']
  #allocation2 [shape = 'f32[8,256]{1,0:T(8,128)}', space=vmem, size = 0x2000, scoped, tag = 'scratch operand']
  %s0 = inlined_call_operand.vmem [shape: f32[8,128], index: 0, kind: input, shape index: {}]
  %s1 = inlined_call_operand.vmem [shape: f32[2,8,128], index: 1, kind: input, shape index: {}, may-alias: {1,6}]
  %s2 = inlined_call_operand.vmem [shape: f32[2,8,128], index: 2, kind: input, shape index: {}, may-alias: {2,7}]
  %s3 = inlined_call_operand.hbm [shape: f32[2,256,512], index: 3, kind: input, shape index: {}]
  %s4 = inlined_call_operand.vmem [shape: f32[2,1,512], index: 4, kind: input, shape index: {}]
  %s5 = inlined_call_operand.hbm [shape: f32[8,128], index: 5, kind: output, shape index: {0}]
  %s6 = inlined_call_operand.vmem [shape: f32[2,8,128], index: 6, kind: output, shape index: {1}, may-alias: {1,6}]
  %s7 = inlined_call_operand.vmem [shape: f32[2,8,128], index: 7, kind: output, shape index: {2}, may-alias: {2,7}]
  %8 = xla_tuple %s5, %s6, %s7
  %s9 = sld [smem:[#allocation0]]
  $region77: #{_fused_lstm_stack_step.1} parent=0
    _
  %s11 = ssub.s32 1, %s9
  %s12 = scalar_select 0, %s11, %s9
  $region1: #{_fused_lstm_stack_step.1} parent=0
    #allocation3 [shape = 'u8[1048576]{0}', space=vmem, size = 0x100000, scoped, tag = 'input window, operand 3']
    #allocation4 [shape = 's32[2]{0}', space=sflag, size = 0x8, scoped, tag = 'scoped memory for _fused_lstm_stack_step.1']
    #allocation5 [shape = 's32[2]{0}', space=sflag, size = 0x8, scoped, tag = 'scoped memory for _fused_lstm_stack_step.1']
    #allocation6 [shape = 'u8[4096]{0}', space=vmem, size = 0x1000, scoped, tag = 'output window, operand 0, single buffered']
    %13 = vsyncpa [#allocation4], 0
    %s14 = scalar_lea.sflag [#allocation4], 1
    %15 = vsyncpa %s14, 0
    %16 = vsyncpa [#allocation5], 0
    loop: start=0, step=1, limit=4
    $region2: #{_fused_lstm_stack_step.1} parent=1 // loop_pre_header
      _
    $region3: #{_fused_lstm_stack_step.1} parent=1 // loop_header
      %s18 = sphi 0, %s22
      %p19 = scmp.ge.s32.totalorder %s18, 4
      %s26 = sphi 0, %s26
      %s28 = sphi 0, %s26
      %s29 = sphi 0, %s28
      %s43 = sphi 0, %s29
      %s49 = sphi 0, %s51
      %s52 = sphi 0, %s49
      %s53 = sphi 0, %s52
      %s69 = sphi 0, %s53
      %s75 = sphi 0, %s77
      %s78 = sphi 0, %s75
      %s79 = sphi 0, %s78
      %s95 = sphi 0, %s79
      %s101 = sphi 0, %s103
      %s104 = sphi 0, %s101
      %s105 = sphi 0, %s104
      %s121 = sphi 0, %s105
      %s127 = sphi 0, %s129
      %s130 = sphi 0, %s127
      %s131 = sphi 0, %s130
      %s147 = sphi 0, %s131
      %s151 = sphi 0, %s151
      %s153 = sphi 0, %s151
      %s154 = sphi 0, %s153
      %s168 = sphi 0, %s154
      %s174 = sphi 0, %s176
      %s177 = sphi 0, %s174
      %s178 = sphi 0, %s177
      %s194 = sphi 0, %s178
      %s200 = sphi 0, %s202
      %s203 = sphi 0, %s200
      %s204 = sphi 0, %s203
      %s220 = sphi 0, %s204
    $region4: #{_fused_lstm_stack_step.1} parent=1 // loop_header_branch
      %21 = sbr.rel (%p19) target = $region8
    $region5: #{_fused_lstm_stack_step.1} parent=1 // loop_body
      %s23 = ssub.s32 %s18, 1
      %s24 = ssub.s32 %s18, 2
      %s25 = sadd.s32 %s18, 1
      %s27 = sadd.s32 %s26, 1
      %p30 = scmp.eq.s32.totalorder %s18, 1
      %p31 = scmp.ne.s32.totalorder %s26, %s28
      %p32 = scmp.eq.s32.totalorder %s18, 0
      %p33 = por %p31, %p32
      %p34 = scmp.ne.s32.totalorder %s26, %s28
      %p35 = scmp.eq.s32.totalorder %s23, 1
      %p36 = por %p34, %p35
      %p37 = scmp.ne.s32.totalorder %s28, %s29
      %p38 = scmp.eq.s32.totalorder %s23, 0
      %p39 = por %p37, %p38
      %p40 = scmp.ne.s32.totalorder %s28, %s29
      %p41 = scmp.eq.s32.totalorder %s24, 1
      %p42 = por %p40, %p41
      %p44 = scmp.ne.s32.totalorder %s29, %s43
      %p45 = scmp.eq.s32.totalorder %s24, 0
      %p46 = por %p44, %p45
      %s47 = ssub.s32 %s18, %s25
      %p48 = scmp.eq.s32.totalorder %s47, 0
      %s50 = sadd.s32 %s49, 1
      %s51 = scalar_select %p48, %s49, %s50
      %p54 = pneg %p48
      %p55 = scmp.eq.s32.totalorder %s18, 1
      %p56 = por %p54, %p55
      %p57 = scmp.ne.s32.totalorder %s49, %s52
      %p58 = scmp.eq.s32.totalorder %s18, 0
      %p59 = por %p57, %p58
      %p60 = scmp.ne.s32.totalorder %s49, %s52
      %p61 = scmp.eq.s32.totalorder %s23, 1
      %p62 = por %p60, %p61
      %p63 = scmp.ne.s32.totalorder %s52, %s53
      %p64 = scmp.eq.s32.totalorder %s23, 0
      %p65 = por %p63, %p64
      %p66 = scmp.ne.s32.totalorder %s52, %s53
      %p67 = scmp.eq.s32.totalorder %s24, 1
      %p68 = por %p66, %p67
      %p70 = scmp.ne.s32.totalorder %s53, %s69
      %p71 = scmp.eq.s32.totalorder %s24, 0
      %p72 = por %p70, %p71
      %s73 = ssub.s32 %s18, %s25
      %p74 = scmp.eq.s32.totalorder %s73, 0
      %s76 = sadd.s32 %s75, 1
      %s77 = scalar_select %p74, %s75, %s76
      %p80 = pneg %p74
      %p81 = scmp.eq.s32.totalorder %s18, 1
      %p82 = por %p80, %p81
      %p83 = scmp.ne.s32.totalorder %s75, %s78
      %p84 = scmp.eq.s32.totalorder %s18, 0
      %p85 = por %p83, %p84
      %p86 = scmp.ne.s32.totalorder %s75, %s78
      %p87 = scmp.eq.s32.totalorder %s23, 1
      %p88 = por %p86, %p87
      %p89 = scmp.ne.s32.totalorder %s78, %s79
      %p90 = scmp.eq.s32.totalorder %s23, 0
      %p91 = por %p89, %p90
      %p92 = scmp.ne.s32.totalorder %s78, %s79
      %p93 = scmp.eq.s32.totalorder %s24, 1
      %p94 = por %p92, %p93
      %p96 = scmp.ne.s32.totalorder %s79, %s95
      %p97 = scmp.eq.s32.totalorder %s24, 0
      %p98 = por %p96, %p97
      %s99 = ssub.s32 %s18, %s25
      %p100 = scmp.eq.s32.totalorder %s99, 0
      %s102 = sadd.s32 %s101, 1
      %s103 = scalar_select %p100, %s101, %s102
      %p106 = pneg %p100
      %p107 = scmp.eq.s32.totalorder %s18, 1
      %p108 = por %p106, %p107
      %p109 = scmp.ne.s32.totalorder %s101, %s104
      %p110 = scmp.eq.s32.totalorder %s18, 0
      %p111 = por %p109, %p110
      %p112 = scmp.ne.s32.totalorder %s101, %s104
      %p113 = scmp.eq.s32.totalorder %s23, 1
      %p114 = por %p112, %p113
      %p115 = scmp.ne.s32.totalorder %s104, %s105
      %p116 = scmp.eq.s32.totalorder %s23, 0
      %p117 = por %p115, %p116
      %p118 = scmp.ne.s32.totalorder %s104, %s105
      %p119 = scmp.eq.s32.totalorder %s24, 1
      %p120 = por %p118, %p119
      %p122 = scmp.ne.s32.totalorder %s105, %s121
      %p123 = scmp.eq.s32.totalorder %s24, 0
      %p124 = por %p122, %p123
      %s125 = ssub.s32 %s18, %s25
      %p126 = scmp.eq.s32.totalorder %s125, 0
      %s128 = sadd.s32 %s127, 1
      %s129 = scalar_select %p126, %s127, %s128
      %p132 = pneg %p126
      %p133 = scmp.eq.s32.totalorder %s18, 1
      %p134 = por %p132, %p133
      %p135 = scmp.ne.s32.totalorder %s127, %s130
      %p136 = scmp.eq.s32.totalorder %s18, 0
      %p137 = por %p135, %p136
      %p138 = scmp.ne.s32.totalorder %s127, %s130
      %p139 = scmp.eq.s32.totalorder %s23, 1
      %p140 = por %p138, %p139
      %p141 = scmp.ne.s32.totalorder %s130, %s131
      %p142 = scmp.eq.s32.totalorder %s23, 0
      %p143 = por %p141, %p142
      %p144 = scmp.ne.s32.totalorder %s130, %s131
      %p145 = scmp.eq.s32.totalorder %s24, 1
      %p146 = por %p144, %p145
      %p148 = scmp.ne.s32.totalorder %s131, %s147
      %p149 = scmp.eq.s32.totalorder %s24, 0
      %p150 = por %p148, %p149
      %s152 = sadd.s32 %s151, 1
      %p155 = scmp.eq.s32.totalorder %s18, 1
      %p156 = scmp.ne.s32.totalorder %s151, %s153
      %p157 = scmp.eq.s32.totalorder %s18, 0
      %p158 = por %p156, %p157
      %p159 = scmp.ne.s32.totalorder %s151, %s153
      %p160 = scmp.eq.s32.totalorder %s23, 1
      %p161 = por %p159, %p160
      %p162 = scmp.ne.s32.totalorder %s153, %s154
      %p163 = scmp.eq.s32.totalorder %s23, 0
      %p164 = por %p162, %p163
      %p165 = scmp.ne.s32.totalorder %s153, %s154
      %p166 = scmp.eq.s32.totalorder %s24, 1
      %p167 = por %p165, %p166
      %p169 = scmp.ne.s32.totalorder %s154, %s168
      %p170 = scmp.eq.s32.totalorder %s24, 0
      %p171 = por %p169, %p170
      %s172 = ssub.s32 %s18, %s25
      %p173 = scmp.eq.s32.totalorder %s172, 0
      %s175 = sadd.s32 %s174, 1
      %s176 = scalar_select %p173, %s174, %s175
      %p179 = pneg %p173
      %p180 = scmp.eq.s32.totalorder %s18, 1
      %p181 = por %p179, %p180
      %p182 = scmp.ne.s32.totalorder %s174, %s177
      %p183 = scmp.eq.s32.totalorder %s18, 0
      %p184 = por %p182, %p183
      %p185 = scmp.ne.s32.totalorder %s174, %s177
      %p186 = scmp.eq.s32.totalorder %s23, 1
      %p187 = por %p185, %p186
      %p188 = scmp.ne.s32.totalorder %s177, %s178
      %p189 = scmp.eq.s32.totalorder %s23, 0
      %p190 = por %p188, %p189
      %p191 = scmp.ne.s32.totalorder %s177, %s178
      %p192 = scmp.eq.s32.totalorder %s24, 1
      %p193 = por %p191, %p192
      %p195 = scmp.ne.s32.totalorder %s178, %s194
      %p196 = scmp.eq.s32.totalorder %s24, 0
      %p197 = por %p195, %p196
      %s198 = ssub.s32 %s18, %s25
      %p199 = scmp.eq.s32.totalorder %s198, 0
      %s201 = sadd.s32 %s200, 1
      %s202 = scalar_select %p199, %s200, %s201
      %p205 = pneg %p199
      %p206 = scmp.eq.s32.totalorder %s18, 1
      %p207 = por %p205, %p206
      %p208 = scmp.ne.s32.totalorder %s200, %s203
      %p209 = scmp.eq.s32.totalorder %s18, 0
      %p210 = por %p208, %p209
      %p211 = scmp.ne.s32.totalorder %s200, %s203
      %p212 = scmp.eq.s32.totalorder %s23, 1
      %p213 = por %p211, %p212
      %p214 = scmp.ne.s32.totalorder %s203, %s204
      %p215 = scmp.eq.s32.totalorder %s23, 0
      %p216 = por %p214, %p215
      %p217 = scmp.ne.s32.totalorder %s203, %s204
      %p218 = scmp.eq.s32.totalorder %s24, 1
      %p219 = por %p217, %p218
      %p221 = scmp.ne.s32.totalorder %s204, %s220
      %p222 = scmp.eq.s32.totalorder %s24, 0
      %p223 = por %p221, %p222
      %p224 = scmp.le.s32.totalorder 1, %s18
      %p225 = scmp.lt.s32.totalorder %s18, 3
      %p226 = pnand %p224, %p225
      %p227 = pneg %p226
      // Predicated region
      $region9: #{_fused_lstm_stack_step.1} parent=5 // pred_check
        _
      $region10: #{_fused_lstm_stack_step.1} parent=5 // pred_check_branch
        %229 = sbr.rel (%p226) target = $region12
      $region11: #{_fused_lstm_stack_step.1} parent=5 // pred_region
        %s230 = ssub.s32 %s18, 1
        // Predicated region
        $region13: #{_fused_lstm_stack_step.1} parent=11 // pred_check
          %p231 = pneg %p39
        $region14: #{_fused_lstm_stack_step.1} parent=11 // pred_check_branch
          %233 = sbr.rel (%p231) target = $region16
        $region15: #{_fused_lstm_stack_step.1} parent=11 // pred_region
          _
        $region16: #{_fused_lstm_stack_step.1} parent=11 // pred_fallthru
          _
      $region12: #{_fused_lstm_stack_step.1} parent=5 // pred_fallthru
        _
      %p234 = scmp.lt.s32.totalorder %s18, 2
      // Predicated region
      $region17: #{_fused_lstm_stack_step.1} parent=5 // pred_check
        %p235 = pneg %p234
      $region18: #{_fused_lstm_stack_step.1} parent=5 // pred_check_branch
        %237 = sbr.rel (%p235) target = $region20
      $region19: #{_fused_lstm_stack_step.1} parent=5 // pred_region
        // Predicated region
        $region21: #{_fused_lstm_stack_step.1} parent=19 // pred_check
          %p238 = pneg %p59
        $region22: #{_fused_lstm_stack_step.1} parent=19 // pred_check_branch
          %240 = sbr.rel (%p238) target = $region24
        $region23: #{_fused_lstm_stack_step.1} parent=19 // pred_region
          %p241 = scmp.lt.s32.totalorder %s18, 1
          %s242 = scalar_select %p241, %s18, 1
          %s243 = smul.addr %s242, 8
          %s244 = scalar_lea.vmem %s1, %s243
        $region24: #{_fused_lstm_stack_step.1} parent=19 // pred_fallthru
          _
        // Predicated region
        $region25: #{_fused_lstm_stack_step.1} parent=19 // pred_check
          %p245 = pneg %p85
        $region26: #{_fused_lstm_stack_step.1} parent=19 // pred_check_branch
          %247 = sbr.rel (%p245) target = $region28
        $region27: #{_fused_lstm_stack_step.1} parent=19 // pred_region
          %p248 = scmp.lt.s32.totalorder %s18, 1
          %s249 = scalar_select %p248, %s18, 1
          %s250 = smul.addr %s249, 8
          %s251 = scalar_lea.vmem %s2, %s250
        $region28: #{_fused_lstm_stack_step.1} parent=19 // pred_fallthru
          _
        // Predicated region
        $region29: #{_fused_lstm_stack_step.1} parent=19 // pred_check
          %p252 = pneg %p111
        $region30: #{_fused_lstm_stack_step.1} parent=19 // pred_check_branch
          %254 = sbr.rel (%p252) target = $region32
        $region31: #{_fused_lstm_stack_step.1} parent=19 // pred_region
          %s255 = sand.u32 %s101, 1
          %s256 = scalar_lea.sflag [#allocation4], %s255
          %s257 = sand.u32 %s101, 1
          %s258 = smul.addr %s257, 1024
          %s259 = scalar_lea.vmem [#allocation3], %s258
          %s261 = ssub.s32 16384, 16384
          %262 = vsyncadd %s256, %s261
          %s263 = smul.addr %s18, 128
          %s264 = smul.addr %s263, 128
          %s265 = scalar_lea.hbm %s3, %s264
          %s266 = sshll.u32 %s259, 4
          %s267 = int_to_ptr.vmem [resolvable:$true] %s266
          %272 = dma.hbm_to_vmem [thread:$0]  %s265, 16384, %s267, %s256, 512, 512, 32
        $region32: #{_fused_lstm_stack_step.1} parent=19 // pred_fallthru
          _
        // Predicated region
        $region33: #{_fused_lstm_stack_step.1} parent=19 // pred_check
          %p273 = pneg %p137
        $region34: #{_fused_lstm_stack_step.1} parent=19 // pred_check_branch
          %275 = sbr.rel (%p273) target = $region36
        $region35: #{_fused_lstm_stack_step.1} parent=19 // pred_region
          %p276 = scmp.lt.s32.totalorder %s18, 1
          %s277 = scalar_select %p276, %s18, 1
          %s278 = smul.addr %s277, 4
          %s279 = scalar_lea.vmem %s4, %s278
        $region36: #{_fused_lstm_stack_step.1} parent=19 // pred_fallthru
          _
      $region20: #{_fused_lstm_stack_step.1} parent=5 // pred_fallthru
        _
      %p280 = scmp.le.s32.totalorder 1, %s18
      %p281 = scmp.lt.s32.totalorder %s18, 3
      %p282 = pnand %p280, %p281
      %p283 = pneg %p282
      // Predicated region
      $region37: #{_fused_lstm_stack_step.1} parent=5 // pred_check
        _
      $region38: #{_fused_lstm_stack_step.1} parent=5 // pred_check_branch
        %285 = sbr.rel (%p282) target = $region40
      $region39: #{_fused_lstm_stack_step.1} parent=5 // pred_region
        %s286 = ssub.s32 %s18, 1
        %s287 = sand.u32 %s104, 1
        %s288 = scalar_lea.sflag [#allocation4], %s287
        %s289 = sand.u32 %s104, 1
        %s290 = smul.addr %s289, 1024
        %s291 = scalar_lea.vmem [#allocation3], %s290
        // Predicated region
        $region41: #{_fused_lstm_stack_step.1} parent=39 // pred_check
          %p292 = pneg %p117
        $region42: #{_fused_lstm_stack_step.1} parent=39 // pred_check_branch
          %294 = sbr.rel (%p292) target = $region44
        $region43: #{_fused_lstm_stack_step.1} parent=39 // pred_region
          %295 = dma.done %s288, 16384
        $region44: #{_fused_lstm_stack_step.1} parent=39 // pred_fallthru
          _
        %p296 = pneg %p39
        %p297 = pneg %p36
        %p298 = scmp.lt.s32.totalorder %s23, 1
        %s299 = scalar_select %p298, %s23, 1
        %s300 = smul.addr %s299, 8
        %s301 = scalar_lea.vmem %s1, %s300
        %p302 = pneg %p65
        %p303 = pneg %p62
        %p304 = scmp.lt.s32.totalorder %s23, 1
        %s305 = scalar_select %p304, %s23, 1
        %s306 = smul.addr %s305, 8
        %s307 = scalar_lea.vmem %s2, %s306
        %p308 = pneg %p91
        %p309 = pneg %p88
        %s310 = sand.u32 %s104, 1
        %s311 = scalar_lea.sflag [#allocation4], %s310
        %s312 = sand.u32 %s104, 1
        %s313 = smul.addr %s312, 1024
        %s314 = scalar_lea.vmem [#allocation3], %s313
        %p315 = pneg %p117
        %p316 = pneg %p114
        %p317 = scmp.lt.s32.totalorder %s23, 1
        %s318 = scalar_select %p317, %s23, 1
        %s319 = smul.addr %s318, 4
        %s320 = scalar_lea.vmem %s4, %s319
        %p321 = pneg %p143
        %p322 = pneg %p140
        %p323 = pneg %p164
        %p324 = pneg %p161
        %p325 = pneg %p190
        %p326 = pneg %p187
        %p327 = scmp.lt.s32.totalorder %s23, 1
        %s328 = scalar_select %p327, %s23, 1
        %s329 = smul.addr %s328, 8
        %s330 = scalar_lea.vmem %s6, %s329
        %p331 = pneg %p216
        %p332 = pneg %p213
        %p333 = scmp.lt.s32.totalorder %s23, 1
        %s334 = scalar_select %p333, %s23, 1
        %s335 = smul.addr %s334, 8
        %s336 = scalar_lea.vmem %s7, %s335
        %p337 = scmp.lt.s32.totalorder %s23, 1
        %s338 = scalar_select %p337, %s23, 1
        %s339 = smul.addr %s338, 8
        %s340 = scalar_lea.vmem %s1, %s339
        %p341 = scmp.lt.s32.totalorder %s23, 1
        %s342 = scalar_select %p341, %s23, 1
        %s343 = smul.addr %s342, 8
        %s344 = scalar_lea.vmem %s2, %s343
        %p345 = scmp.lt.s32.totalorder %s23, 1
        %s346 = scalar_select %p345, %s23, 1
        %s347 = smul.addr %s346, 4
        %s348 = scalar_lea.vmem %s4, %s347
        %p349 = scmp.lt.s32.totalorder %s23, 1
        %s350 = scalar_select %p349, %s23, 1
        %s351 = smul.addr %s350, 8
        %s352 = scalar_lea.vmem %s6, %s351
        %p353 = scmp.lt.s32.totalorder %s23, 1
        %s354 = scalar_select %p353, %s23, 1
        %s355 = smul.addr %s354, 8
        %s356 = scalar_lea.vmem %s7, %s355
        %p357 = scmp.eq.s32.totalorder %s23, 0
        // Predicated region
        $region45: #{_fused_lstm_stack_step.1} parent=39 // pred_check
          %p358 = pneg %p357
        $region46: #{_fused_lstm_stack_step.1} parent=39 // pred_check_branch
          %360 = sbr.rel (%p358) target = $region48
        $region47: #{_fused_lstm_stack_step.1} parent=39 // pred_region
          %v361 = vld [vmem:[%s0] sm:$0xff]
          %362 = vst [vmem:[#allocation2] sm:$0xff] %v361
        $region48: #{_fused_lstm_stack_step.1} parent=39 // pred_fallthru
          _
        %v363 = vld [vmem:[%s340] sm:$0xff]
        %364 = vst [vmem:[#allocation2 + $0x8] sm:$0xff] %v363
        %v365 = vld [vmem:[#allocation2] sm:$0xff]
        %v366 = vld [vmem:[#allocation2 + $0x8] sm:$0xff]
        %v367 = vld [vmem:[%s291] sm:$0xff]
        %v368 = vld [vmem:[%s291 + $0x8] sm:$0xff]
        %v369 = vld [vmem:[%s291 + $0x10] sm:$0xff]
        %v370 = vld [vmem:[%s291 + $0x18] sm:$0xff]
        %v371 = vld [vmem:[%s291 + $0x20] sm:$0xff]
        %v372 = vld [vmem:[%s291 + $0x28] sm:$0xff]
        %v373 = vld [vmem:[%s291 + $0x30] sm:$0xff]
        %v374 = vld [vmem:[%s291 + $0x38] sm:$0xff]
        %v375 = vld [vmem:[%s291 + $0x40] sm:$0xff]
        %v376 = vld [vmem:[%s291 + $0x48] sm:$0xff]
        %v377 = vld [vmem:[%s291 + $0x50] sm:$0xff]
        %v378 = vld [vmem:[%s291 + $0x58] sm:$0xff]
        %v379 = vld [vmem:[%s291 + $0x60] sm:$0xff]
        %v380 = vld [vmem:[%s291 + $0x68] sm:$0xff]
        %v381 = vld [vmem:[%s291 + $0x70] sm:$0xff]
        %v382 = vld [vmem:[%s291 + $0x78] sm:$0xff]
        %v383 = vld [vmem:[%s291 + $0x80] sm:$0xff]
        %v384 = vld [vmem:[%s291 + $0x88] sm:$0xff]
        %v385 = vld [vmem:[%s291 + $0x90] sm:$0xff]
        %v386 = vld [vmem:[%s291 + $0x98] sm:$0xff]
        %v387 = vld [vmem:[%s291 + $0xa0] sm:$0xff]
        %v388 = vld [vmem:[%s291 + $0xa8] sm:$0xff]
        %v389 = vld [vmem:[%s291 + $0xb0] sm:$0xff]
        %v390 = vld [vmem:[%s291 + $0xb8] sm:$0xff]
        %v391 = vld [vmem:[%s291 + $0xc0] sm:$0xff]
        %v392 = vld [vmem:[%s291 + $0xc8] sm:$0xff]
        %v393 = vld [vmem:[%s291 + $0xd0] sm:$0xff]
        %v394 = vld [vmem:[%s291 + $0xd8] sm:$0xff]
        %v395 = vld [vmem:[%s291 + $0xe0] sm:$0xff]
        %v396 = vld [vmem:[%s291 + $0xe8] sm:$0xff]
        %v397 = vld [vmem:[%s291 + $0xf0] sm:$0xff]
        %v398 = vld [vmem:[%s291 + $0xf8] sm:$0xff]
        %v399 = vld [vmem:[%s291 + $0x100] sm:$0xff]
        %v400 = vld [vmem:[%s291 + $0x108] sm:$0xff]
        %v401 = vld [vmem:[%s291 + $0x110] sm:$0xff]
        %v402 = vld [vmem:[%s291 + $0x118] sm:$0xff]
        %v403 = vld [vmem:[%s291 + $0x120] sm:$0xff]
        %v404 = vld [vmem:[%s291 + $0x128] sm:$0xff]
        %v405 = vld [vmem:[%s291 + $0x130] sm:$0xff]
        %v406 = vld [vmem:[%s291 + $0x138] sm:$0xff]
        %v407 = vld [vmem:[%s291 + $0x140] sm:$0xff]
        %v408 = vld [vmem:[%s291 + $0x148] sm:$0xff]
        %v409 = vld [vmem:[%s291 + $0x150] sm:$0xff]
        %v410 = vld [vmem:[%s291 + $0x158] sm:$0xff]
        %v411 = vld [vmem:[%s291 + $0x160] sm:$0xff]
        %v412 = vld [vmem:[%s291 + $0x168] sm:$0xff]
        %v413 = vld [vmem:[%s291 + $0x170] sm:$0xff]
        %v414 = vld [vmem:[%s291 + $0x178] sm:$0xff]
        %v415 = vld [vmem:[%s291 + $0x180] sm:$0xff]
        %v416 = vld [vmem:[%s291 + $0x188] sm:$0xff]
        %v417 = vld [vmem:[%s291 + $0x190] sm:$0xff]
        %v418 = vld [vmem:[%s291 + $0x198] sm:$0xff]
        %v419 = vld [vmem:[%s291 + $0x1a0] sm:$0xff]
        %v420 = vld [vmem:[%s291 + $0x1a8] sm:$0xff]
        %v421 = vld [vmem:[%s291 + $0x1b0] sm:$0xff]
        %v422 = vld [vmem:[%s291 + $0x1b8] sm:$0xff]
        %v423 = vld [vmem:[%s291 + $0x1c0] sm:$0xff]
        %v424 = vld [vmem:[%s291 + $0x1c8] sm:$0xff]
        %v425 = vld [vmem:[%s291 + $0x1d0] sm:$0xff]
        %v426 = vld [vmem:[%s291 + $0x1d8] sm:$0xff]
        %v427 = vld [vmem:[%s291 + $0x1e0] sm:$0xff]
        %v428 = vld [vmem:[%s291 + $0x1e8] sm:$0xff]
        %v429 = vld [vmem:[%s291 + $0x1f0] sm:$0xff]
        %v430 = vld [vmem:[%s291 + $0x1f8] sm:$0xff]
        %v431 = vld [vmem:[%s291 + $0x200] sm:$0xff]
        %v432 = vld [vmem:[%s291 + $0x208] sm:$0xff]
        %v433 = vld [vmem:[%s291 + $0x210] sm:$0xff]
        %v434 = vld [vmem:[%s291 + $0x218] sm:$0xff]
        %v435 = vld [vmem:[%s291 + $0x220] sm:$0xff]
        %v436 = vld [vmem:[%s291 + $0x228] sm:$0xff]
        %v437 = vld [vmem:[%s291 + $0x230] sm:$0xff]
        %v438 = vld [vmem:[%s291 + $0x238] sm:$0xff]
        %v439 = vld [vmem:[%s291 + $0x240] sm:$0xff]
        %v440 = vld [vmem:[%s291 + $0x248] sm:$0xff]
        %v441 = vld [vmem:[%s291 + $0x250] sm:$0xff]
        %v442 = vld [vmem:[%s291 + $0x258] sm:$0xff]
        %v443 = vld [vmem:[%s291 + $0x260] sm:$0xff]
        %v444 = vld [vmem:[%s291 + $0x268] sm:$0xff]
        %v445 = vld [vmem:[%s291 + $0x270] sm:$0xff]
        %v446 = vld [vmem:[%s291 + $0x278] sm:$0xff]
        %v447 = vld [vmem:[%s291 + $0x280] sm:$0xff]
        %v448 = vld [vmem:[%s291 + $0x288] sm:$0xff]
        %v449 = vld [vmem:[%s291 + $0x290] sm:$0xff]
        %v450 = vld [vmem:[%s291 + $0x298] sm:$0xff]
        %v451 = vld [vmem:[%s291 + $0x2a0] sm:$0xff]
        %v452 = vld [vmem:[%s291 + $0x2a8] sm:$0xff]
        %v453 = vld [vmem:[%s291 + $0x2b0] sm:$0xff]
        %v454 = vld [vmem:[%s291 + $0x2b8] sm:$0xff]
        %v455 = vld [vmem:[%s291 + $0x2c0] sm:$0xff]
        %v456 = vld [vmem:[%s291 + $0x2c8] sm:$0xff]
        %v457 = vld [vmem:[%s291 + $0x2d0] sm:$0xff]
        %v458 = vld [vmem:[%s291 + $0x2d8] sm:$0xff]
        %v459 = vld [vmem:[%s291 + $0x2e0] sm:$0xff]
        %v460 = vld [vmem:[%s291 + $0x2e8] sm:$0xff]
        %v461 = vld [vmem:[%s291 + $0x2f0] sm:$0xff]
        %v462 = vld [vmem:[%s291 + $0x2f8] sm:$0xff]
        %v463 = vld [vmem:[%s291 + $0x300] sm:$0xff]
        %v464 = vld [vmem:[%s291 + $0x308] sm:$0xff]
        %v465 = vld [vmem:[%s291 + $0x310] sm:$0xff]
        %v466 = vld [vmem:[%s291 + $0x318] sm:$0xff]
        %v467 = vld [vmem:[%s291 + $0x320] sm:$0xff]
        %v468 = vld [vmem:[%s291 + $0x328] sm:$0xff]
        %v469 = vld [vmem:[%s291 + $0x330] sm:$0xff]
        %v470 = vld [vmem:[%s291 + $0x338] sm:$0xff]
        %v471 = vld [vmem:[%s291 + $0x340] sm:$0xff]
        %v472 = vld [vmem:[%s291 + $0x348] sm:$0xff]
        %v473 = vld [vmem:[%s291 + $0x350] sm:$0xff]
        %v474 = vld [vmem:[%s291 + $0x358] sm:$0xff]
        %v475 = vld [vmem:[%s291 + $0x360] sm:$0xff]
        %v476 = vld [vmem:[%s291 + $0x368] sm:$0xff]
        %v477 = vld [vmem:[%s291 + $0x370] sm:$0xff]
        %v478 = vld [vmem:[%s291 + $0x378] sm:$0xff]
        %v479 = vld [vmem:[%s291 + $0x380] sm:$0xff]
        %v480 = vld [vmem:[%s291 + $0x388] sm:$0xff]
        %v481 = vld [vmem:[%s291 + $0x390] sm:$0xff]
        %v482 = vld [vmem:[%s291 + $0x398] sm:$0xff]
        %v483 = vld [vmem:[%s291 + $0x3a0] sm:$0xff]
        %v484 = vld [vmem:[%s291 + $0x3a8] sm:$0xff]
        %v485 = vld [vmem:[%s291 + $0x3b0] sm:$0xff]
        %v486 = vld [vmem:[%s291 + $0x3b8] sm:$0xff]
        %v487 = vld [vmem:[%s291 + $0x3c0] sm:$0xff]
        %v488 = vld [vmem:[%s291 + $0x3c8] sm:$0xff]
        %v489 = vld [vmem:[%s291 + $0x3d0] sm:$0xff]
        %v490 = vld [vmem:[%s291 + $0x3d8] sm:$0xff]
        %v491 = vld [vmem:[%s291 + $0x3e0] sm:$0xff]
        %v492 = vld [vmem:[%s291 + $0x3e8] sm:$0xff]
        %v493 = vld [vmem:[%s291 + $0x3f0] sm:$0xff]
        %v494 = vld [vmem:[%s291 + $0x3f8] sm:$0xff]
        %v495 = vld [vmem:[%s348] sm:$0xf]
        %v497 = vlaneseq
        %v498 = vshrl.u32 %v497, 7
        %v499 = vsub.s32 0, %v498
        %v500 = vrot.slane %v495, %v499
        %v501 = vlaneseq
        %v502 = vshrl.u32 %v501, 7
        %v503 = vsub.s32 1, %v502
        %v504 = vrot.slane %v495, %v503
        %v505 = vlaneseq
        %v506 = vshrl.u32 %v505, 7
        %v507 = vsub.s32 2, %v506
        %v508 = vrot.slane %v495, %v507
        %v509 = vlaneseq
        %v510 = vshrl.u32 %v509, 7
        %v511 = vsub.s32 3, %v510
        %v512 = vrot.slane %v495, %v511
        %517 = vmatprep.subr.mxu0 %v368
        %518 = vmatpush1.msra.mxu0 %v367
        %519 = vmatprep.subr.mxu0 %v372
        %520 = vmatpush1.msra.mxu0 %v371
        %521 = vmatprep.subr.mxu0 %v376
        %522 = vmatpush1.msra.mxu0 %v375
        %523 = vmatprep.subr.mxu0 %v380
        %524 = vmatpush1.msra.mxu0 %v379
        %525 = vmatprep.subr.mxu0 %v384
        %526 = vmatpush1.msra.mxu0 %v383
        %527 = vmatprep.subr.mxu0 %v388
        %528 = vmatpush1.msra.mxu0 %v387
        %529 = vmatprep.subr.mxu0 %v392
        %530 = vmatpush1.msra.mxu0 %v391
        %531 = vmatprep.subr.mxu0 %v396
        %532 = vmatpush1.msra.mxu0 %v395
        %533 = vmatprep.subr.mxu0 %v400
        %534 = vmatpush1.msra.mxu0 %v399
        %535 = vmatprep.subr.mxu0 %v404
        %536 = vmatpush1.msra.mxu0 %v403
        %537 = vmatprep.subr.mxu0 %v408
        %538 = vmatpush1.msra.mxu0 %v407
        %539 = vmatprep.subr.mxu0 %v412
        %540 = vmatpush1.msra.mxu0 %v411
        %541 = vmatprep.subr.mxu0 %v416
        %542 = vmatpush1.msra.mxu0 %v415
        %543 = vmatprep.subr.mxu0 %v420
        %544 = vmatpush1.msra.mxu0 %v419
        %545 = vmatprep.subr.mxu0 %v424
        %546 = vmatpush1.msra.mxu0 %v423
        %547 = vmatprep.subr.mxu0 %v428
        %548 = vmatpush1.msra.mxu0 %v427
        %549 = vmatprep.subr.mxu0 %v432
        %550 = vmatpush1.msra.mxu0 %v431
        %551 = vmatprep.subr.mxu0 %v436
        %552 = vmatpush1.msra.mxu0 %v435
        %553 = vmatprep.subr.mxu0 %v440
        %554 = vmatpush1.msra.mxu0 %v439
        %555 = vmatprep.subr.mxu0 %v444
        %556 = vmatpush1.msra.mxu0 %v443
        %557 = vmatprep.subr.mxu0 %v448
        %558 = vmatpush1.msra.mxu0 %v447
        %559 = vmatprep.subr.mxu0 %v452
        %560 = vmatpush1.msra.mxu0 %v451
        %561 = vmatprep.subr.mxu0 %v456
        %562 = vmatpush1.msra.mxu0 %v455
        %563 = vmatprep.subr.mxu0 %v460
        %564 = vmatpush1.msra.mxu0 %v459
        %565 = vmatprep.subr.mxu0 %v464
        %566 = vmatpush1.msra.mxu0 %v463
        %567 = vmatprep.subr.mxu0 %v468
        %568 = vmatpush1.msra.mxu0 %v467
        %569 = vmatprep.subr.mxu0 %v472
        %570 = vmatpush1.msra.mxu0 %v471
        %571 = vmatprep.subr.mxu0 %v476
        %572 = vmatpush1.msra.mxu0 %v475
        %573 = vmatprep.subr.mxu0 %v480
        %574 = vmatpush1.msra.mxu0 %v479
        %575 = vmatprep.subr.mxu0 %v484
        %576 = vmatpush1.msra.mxu0 %v483
        %577 = vmatprep.subr.mxu0 %v488
        %578 = vmatpush1.msra.mxu0 %v487
        %579 = vmatprep.subr.mxu0 %v492
        %580 = vmatpush1.msra.mxu0 %v491
        %581 = vmatprep.mubr.f32.mxu0 %v366
        %582 = vmatmul.mubr.f32.gmra.mrb[0].mxu0 %v365
        %v583 = vpop.f32.mrb[0].mxu0
        %v584 = vadd.f32 %v500, %v583
        %v585 = vpop.f32.mrb[0].mxu0
        %v586 = vadd.f32 %v504, %v585
        %587 = vdwg.mxu0
        %588 = vmatprep.subr.mxu0 %v370
        %589 = vmatpush1.msra.mxu0 %v369
        %590 = vmatprep.subr.mxu0 %v374
        %591 = vmatpush1.msra.mxu0 %v373
        %592 = vmatprep.subr.mxu0 %v378
        %593 = vmatpush1.msra.mxu0 %v377
        %594 = vmatprep.subr.mxu0 %v382
        %595 = vmatpush1.msra.mxu0 %v381
        %596 = vmatprep.subr.mxu0 %v386
        %597 = vmatpush1.msra.mxu0 %v385
        %598 = vmatprep.subr.mxu0 %v390
        %599 = vmatpush1.msra.mxu0 %v389
        %600 = vmatprep.subr.mxu0 %v394
        %601 = vmatpush1.msra.mxu0 %v393
        %602 = vmatprep.subr.mxu0 %v398
        %603 = vmatpush1.msra.mxu0 %v397
        %604 = vmatprep.subr.mxu0 %v402
        %605 = vmatpush1.msra.mxu0 %v401
        %606 = vmatprep.subr.mxu0 %v406
        %607 = vmatpush1.msra.mxu0 %v405
        %608 = vmatprep.subr.mxu0 %v410
        %609 = vmatpush1.msra.mxu0 %v409
        %610 = vmatprep.subr.mxu0 %v414
        %611 = vmatpush1.msra.mxu0 %v413
        %612 = vmatprep.subr.mxu0 %v418
        %613 = vmatpush1.msra.mxu0 %v417
        %614 = vmatprep.subr.mxu0 %v422
        %615 = vmatpush1.msra.mxu0 %v421
        %616 = vmatprep.subr.mxu0 %v426
        %617 = vmatpush1.msra.mxu0 %v425
        %618 = vmatprep.subr.mxu0 %v430
        %619 = vmatpush1.msra.mxu0 %v429
        %620 = vmatprep.subr.mxu0 %v434
        %621 = vmatpush1.msra.mxu0 %v433
        %622 = vmatprep.subr.mxu0 %v438
        %623 = vmatpush1.msra.mxu0 %v437
        %624 = vmatprep.subr.mxu0 %v442
        %625 = vmatpush1.msra.mxu0 %v441
        %626 = vmatprep.subr.mxu0 %v446
        %627 = vmatpush1.msra.mxu0 %v445
        %628 = vmatprep.subr.mxu0 %v450
        %629 = vmatpush1.msra.mxu0 %v449
        %630 = vmatprep.subr.mxu0 %v454
        %631 = vmatpush1.msra.mxu0 %v453
        %632 = vmatprep.subr.mxu0 %v458
        %633 = vmatpush1.msra.mxu0 %v457
        %634 = vmatprep.subr.mxu0 %v462
        %635 = vmatpush1.msra.mxu0 %v461
        %636 = vmatprep.subr.mxu0 %v466
        %637 = vmatpush1.msra.mxu0 %v465
        %638 = vmatprep.subr.mxu0 %v470
        %639 = vmatpush1.msra.mxu0 %v469
        %640 = vmatprep.subr.mxu0 %v474
        %641 = vmatpush1.msra.mxu0 %v473
        %642 = vmatprep.subr.mxu0 %v478
        %643 = vmatpush1.msra.mxu0 %v477
        %644 = vmatprep.subr.mxu0 %v482
        %645 = vmatpush1.msra.mxu0 %v481
        %646 = vmatprep.subr.mxu0 %v486
        %647 = vmatpush1.msra.mxu0 %v485
        %648 = vmatprep.subr.mxu0 %v490
        %649 = vmatpush1.msra.mxu0 %v489
        %650 = vmatprep.subr.mxu0 %v494
        %651 = vmatpush1.msra.mxu0 %v493
        %652 = vmatprep.mubr.f32.mxu0 %v366
        %653 = vmatmul.mubr.f32.gmra.mrb[0].mxu0 %v365
        %v654 = vpop.f32.mrb[0].mxu0
        %v655 = vadd.f32 %v508, %v654
        %v656 = vpop.f32.mrb[0].mxu0
        %v657 = vadd.f32 %v512, %v656
        %658 = vdwg.mxu0
        %v659 = vxor.u32 %v584, 2147483648
        %v660 = vmul.f32 %v659, 1.442695
        %v661 = vpow.pop %v660
        %v662 = vadd.f32 %v661, 1.0
        %v663 = vrcp.pop %v662
        %v664 = vmul.f32 1.0, %v663
        %v665 = vxor.u32 %v586, 2147483648
        %v666 = vmul.f32 %v665, 1.442695
        %v667 = vpow.pop %v666
        %v668 = vadd.f32 %v667, 1.0
        %v669 = vrcp.pop %v668
        %v670 = vmul.f32 1.0, %v669
        %v671 = vtanh.pop %v655
        %v672 = vxor.u32 %v657, 2147483648
        %v673 = vmul.f32 %v672, 1.442695
        %v674 = vpow.pop %v673
        %v675 = vadd.f32 %v674, 1.0
        %v676 = vrcp.pop %v675
        %v677 = vmul.f32 1.0, %v676
        %v678 = vld [vmem:[%s344] sm:$0xff]
        %v679 = vmul.f32 %v670, %v678
        %v680 = vmul.f32 %v664, %v671
        %v681 = vadd.f32 %v679, %v680
        %v682 = vtanh.pop %v681
        %v683 = vmul.f32 %v677, %v682
        %684 = vst [vmem:[%s352] sm:$0xff] %v683
        %685 = vst [vmem:[%s356] sm:$0xff] %v681
        %686 = vst [vmem:[#allocation6] sm:$0xff] %v683
        %687 = vst [vmem:[#allocation2] sm:$0xff] %v683
        %p688 = scmp.lt.s32.totalorder %s23, 1
        %s689 = scalar_select %p688, %s23, 1
        %s690 = smul.addr %s689, 8
        %s691 = scalar_lea.vmem %s6, %s690
        %p692 = scmp.lt.s32.totalorder %s23, 1
        %s693 = scalar_select %p692, %s23, 1
        %s694 = smul.addr %s693, 8
        %s695 = scalar_lea.vmem %s7, %s694
        // Predicated region
        $region49: #{_fused_lstm_stack_step.1} parent=39 // pred_check
          %p696 = pneg %p161
        $region50: #{_fused_lstm_stack_step.1} parent=39 // pred_check_branch
          %698 = sbr.rel (%p696) target = $region52
        $region51: #{_fused_lstm_stack_step.1} parent=39 // pred_region
          %s700 = ssub.s32 128, 128
          %701 = vsyncadd [#allocation5], %s700
          %s703 = sshll.u32 [#allocation6], 4
          %s704 = int_to_ptr.vmem [resolvable:$true] %s703
          %706 = dma.vmem_to_hbm [thread:$0]  %s704, 128, %s5, [#allocation5]
        $region52: #{_fused_lstm_stack_step.1} parent=39 // pred_fallthru
          _
        // Predicated region
        $region53: #{_fused_lstm_stack_step.1} parent=39 // pred_check
          %p707 = pneg %p187
        $region54: #{_fused_lstm_stack_step.1} parent=39 // pred_check_branch
          %709 = sbr.rel (%p707) target = $region56
        $region55: #{_fused_lstm_stack_step.1} parent=39 // pred_region
          _
        $region56: #{_fused_lstm_stack_step.1} parent=39 // pred_fallthru
          _
        // Predicated region
        $region57: #{_fused_lstm_stack_step.1} parent=39 // pred_check
          %p710 = pneg %p213
        $region58: #{_fused_lstm_stack_step.1} parent=39 // pred_check_branch
          %712 = sbr.rel (%p710) target = $region60
        $region59: #{_fused_lstm_stack_step.1} parent=39 // pred_region
          _
        $region60: #{_fused_lstm_stack_step.1} parent=39 // pred_fallthru
          _
        // Predicated region
        $region61: #{_fused_lstm_stack_step.1} parent=39 // pred_check
          %p713 = pneg %p161
        $region62: #{_fused_lstm_stack_step.1} parent=39 // pred_check_branch
          %715 = sbr.rel (%p713) target = $region64
        $region63: #{_fused_lstm_stack_step.1} parent=39 // pred_region
          %716 = dma.done [#allocation5], 128
        $region64: #{_fused_lstm_stack_step.1} parent=39 // pred_fallthru
          _
      $region40: #{_fused_lstm_stack_step.1} parent=5 // pred_fallthru
        _
      %p717 = scmp.le.s32.totalorder 2, %s18
      // Predicated region
      $region65: #{_fused_lstm_stack_step.1} parent=5 // pred_check
        %p718 = pneg %p717
      $region66: #{_fused_lstm_stack_step.1} parent=5 // pred_check_branch
        %720 = sbr.rel (%p718) target = $region68
      $region67: #{_fused_lstm_stack_step.1} parent=5 // pred_region
        %s721 = ssub.s32 %s18, 2
        // Predicated region
        $region69: #{_fused_lstm_stack_step.1} parent=67 // pred_check
          %p722 = pneg %p193
        $region70: #{_fused_lstm_stack_step.1} parent=67 // pred_check_branch
          %724 = sbr.rel (%p722) target = $region72
        $region71: #{_fused_lstm_stack_step.1} parent=67 // pred_region
          %p725 = scmp.lt.s32.totalorder %s24, 1
          %s726 = scalar_select %p725, %s24, 1
          %s727 = smul.addr %s726, 8
          %s728 = scalar_lea.vmem %s6, %s727
        $region72: #{_fused_lstm_stack_step.1} parent=67 // pred_fallthru
          _
        // Predicated region
        $region73: #{_fused_lstm_stack_step.1} parent=67 // pred_check
          %p729 = pneg %p219
        $region74: #{_fused_lstm_stack_step.1} parent=67 // pred_check_branch
          %731 = sbr.rel (%p729) target = $region76
        $region75: #{_fused_lstm_stack_step.1} parent=67 // pred_region
          %p732 = scmp.lt.s32.totalorder %s24, 1
          %s733 = scalar_select %p732, %s24, 1
          %s734 = smul.addr %s733, 8
          %s735 = scalar_lea.vmem %s7, %s734
        $region76: #{_fused_lstm_stack_step.1} parent=67 // pred_fallthru
          _
      $region68: #{_fused_lstm_stack_step.1} parent=5 // pred_fallthru
        _
    $region6: #{_fused_lstm_stack_step.1} parent=1 // loop_footer
      %s22 = sadd.s32 1, %s18
    $region7: #{_fused_lstm_stack_step.1} parent=1 // loop_footer_branch
      %17 = sbr.rel target = $region3
    $region8: #{_fused_lstm_stack_step.1} parent=1 // loop_exit
      _
    %736 = vsyncpa [#allocation4], 1
    %s737 = scalar_lea.sflag [#allocation4], 1
    %738 = vsyncpa %s737, 1
    %739 = vsyncpa [#allocation5], 1
    %s740 = scalar_lea.sflag [#allocation5], 1
    %741 = vsyncpa %s740, 1

</llo_original>
